<compile_context>
chip_gen: v7x
topology: tpu7x:2x2x1
jax: 0.10.0
libtpu: 0.0.40
codegen_flags: <defaults>
</compile_context>

<pallas_src>
import jax
import jax.numpy as jnp
from jax import lax
from jax.experimental import pallas as pl
from jax.experimental.pallas import tpu as pltpu


def _mlp_kernel(x_ref, w1_ref, b1_ref, w2_ref, b2_ref, w3t_ref, b3_ref, oT_ref):
    """One batch tile of MetalNet (eval mode), transposed dataflow (batch on lanes)."""
    # In-kernel cast (VPU slot, slack under the MXU-bound dots); x stays f32 in HBM.
    x = x_ref[...].astype(w1_ref.dtype)                              # (TILE_B, in) bf16

    # Layer 1 on the MXU, NT contraction: (128, in) x (TILE_B, in)^T -> (128, TILE_B).
    h1 = lax.dot_general(w1_ref[...], x,
                         dimension_numbers=(((1,), (1,)), ((), ())),
                         preferred_element_type=jnp.float32) + b1_ref[...]
    h1 = jnp.maximum(h1, 0.0)
    # TODO(synk): nn.Dropout(0.3)/(0.2) are eval-mode identities here; a training path
    # would build keep-masks with pltpu.prng_seed + pltpu.prng_random_bits.

    # Layer 2 on the MXU: (64, 128) @ (128, TILE_B) -> (64, TILE_B).
    h2 = jnp.dot(w2_ref[...], h1.astype(w2_ref.dtype),
                 preferred_element_type=jnp.float32) + b2_ref[...]
    h2 = jnp.maximum(h2, 0.0)

    # Layer 3: tiny (num_classes x 64).  Keep it off the saturating MXU-push slot when
    # num_classes is small: broadcast-multiply (VPU) + sublane sum (XLU), all in f32
    # (v5e has no bf16 VPU, and f32 is exact vs the reference here).
    num_classes = w3t_ref.shape[1]
    if num_classes <= 8:
        w3t = w3t_ref[...]                                           # (64, C) f32
        rows = [jnp.sum(h2 * w3t[:, c:c + 1], axis=0, keepdims=True)
                for c in range(num_classes)]                         # each (1, TILE_B)
        out = jnp.concatenate(rows, axis=0) + b3_ref[...]            # (C, TILE_B)
    else:
        out = lax.dot_general(w3t_ref[...].astype(w2_ref.dtype), h2.astype(w2_ref.dtype),
                              dimension_numbers=(((0,), (0,)), ((), ())),
                              preferred_element_type=jnp.float32) + b3_ref[...]
    oT_ref[...] = out.astype(oT_ref.dtype)


def prepare_params(params, compute_dtype=jnp.bfloat16):
    """One-time conversion of PyTorch-layout params {w:(out,in), b:(out,)} to kernel layout.
    Hoisted out of the forward so repeated calls don't re-emit convert/reshape ops."""
    return {
        "w1": params["w1"].astype(compute_dtype),                 # (128, in)   bf16
        "b1": params["b1"].reshape(-1, 1).astype(jnp.float32),    # (128, 1)    f32
        "w2": params["w2"].astype(compute_dtype),                 # (64, 128)   bf16
        "b2": params["b2"].reshape(-1, 1).astype(jnp.float32),    # (64, 1)     f32
        "w3t": params["w3"].T.astype(jnp.float32),                # (64, C)     f32 (VPU path)
        "b3": params["b3"].reshape(-1, 1).astype(jnp.float32),    # (C, 1)      f32
    }


def metalnet_forward(x, prepared, *, tile_b=8192):
    """x: (B, input_dim) float32 (natural layout).  prepared: output of prepare_params().
    Returns (B, num_classes) float32 logits (eval-mode MetalNet forward)."""
    B, input_dim = x.shape
    w1, b1 = prepared["w1"], prepared["b1"]
    w2, b2 = prepared["w2"], prepared["b2"]
    w3t, b3 = prepared["w3t"], prepared["b3"]
    num_classes = w3t.shape[1]

    # --- batch tiling --------------------------------------------------------
    # Lane axis needs multiples of 128.  Per-tile VMEM: tile_b=8192 -> ~11 MiB (fits the
    # 16 MiB v5e scoped default); 16384 -> ~22 MiB (v6e/v7x, raise vmem_limit on v5e).
    tile_b = max(128, (tile_b // 128) * 128)
    b128 = pl.cdiv(B, 128) * 128
    tb = max(128, min(tile_b, b128))
    # Guarantee >= 2 grid steps whenever possible so "parallel" actually feeds both v7x
    # TensorCores; no cost on single-TC v5e/v6e.
    if b128 >= 256:
        tb = min(tb, max(128, (b128 // 2) // 128 * 128))
    b_pad = pl.cdiv(B, tb) * tb
    grid = (b_pad // tb,)

    if b_pad != B:                       # rows only; no transpose, no dtype conversion pass
        x = jnp.pad(x, ((0, b_pad - B), (0, 0)))

    # Constant index_map -> weights/biases stay VMEM-resident across all grid steps.
    resident = lambda a: pl.BlockSpec(a.shape, lambda i: (0, 0))

    outT = pl.pallas_call(
        _mlp_kernel,
        out_shape=jax.ShapeDtypeStruct((num_classes, b_pad), jnp.float32),
        grid=grid,
        in_specs=[
            # x streamed in natural layout: one contiguous (tb * input_dim) stripe per step,
            # double-buffered by the default pipeline (no pl.Buffered(3) needed).
            pl.BlockSpec((tb, input_dim), lambda i: (i, 0)),
            resident(w1), resident(b1),
            resident(w2), resident(b2),
            resident(w3t), resident(b3),
        ],
        out_specs=pl.BlockSpec((num_classes, tb), lambda i: (0, i)),   # lane-dense stores
        compiler_params=pltpu.CompilerParams(
            dimension_semantics=("parallel",),          # v7x: shard batch tiles across TCs
            vmem_limit_bytes=32 * 1024 * 1024),
    )(x, w1, b1, w2, b2, w3t, b3)

    # Drop batch padding; cheap (num_classes, B) -> (B, num_classes) transpose.
    return outT[:, :B].T


def init_params(input_dim, num_classes=2, key=jax.random.PRNGKey(0)):
    """Deterministic init with PyTorch nn.Linear shapes: W (out, in), b (out,)."""
    def lin(k, fan_in, fan_out):
        bound = 1.0 / (fan_in ** 0.5)
        kw, kb = jax.random.split(k)
        w = jax.random.uniform(kw, (fan_out, fan_in), jnp.float32, -bound, bound)
        b = jax.random.uniform(kb, (fan_out,), jnp.float32, -bound, bound)
        return w, b
    k1, k2, k3 = jax.random.split(key, 3)
    w1, b1 = lin(k1, input_dim, 128)
    w2, b2 = lin(k2, 128, 64)
    w3, b3 = lin(k3, 64, num_classes)
    return {"w1": w1, "b1": b1, "w2": w2, "b2": b2, "w3": w3, "b3": b3}


if __name__ == "__main__":
    input_dim = 32
    num_classes = 2
    batch = 8

    key = jax.random.PRNGKey(0)
    kx, kp = jax.random.split(key)
    x = jax.random.normal(kx, (batch, input_dim), jnp.float32)
    params = init_params(input_dim, num_classes, kp)
    prepared = prepare_params(params)      # one-time weight prep, hoisted out of the call

    out = metalnet_forward(x, prepared)
    jax.block_until_ready(out)

    # Pure-JAX reference with matching mixed precision (bf16 MXU operands for layers 1/2,
    # f32 accumulation / bias / ReLU, f32 layer 3), eval-mode dropout (identity).
    bf = jnp.bfloat16
    h1 = jnp.maximum(jnp.dot(x.astype(bf), params["w1"].astype(bf).T,
                             preferred_element_type=jnp.float32) + params["b1"], 0.0)
    h2 = jnp.maximum(jnp.dot(h1.astype(bf), params["w2"].astype(bf).T,
                             preferred_element_type=jnp.float32) + params["b2"], 0.0)
    ref = jnp.dot(h2, params["w3"].T) + params["b3"]

    assert out.shape == (batch, num_classes)
    err = float(jnp.max(jnp.abs(out - ref)))
    assert jnp.allclose(out, ref, atol=1e-2, rtol=1e-2), err

    print("KERNEL_OK")
</pallas_src>

<mosaic_0001>
module attributes {stable_mosaic.version = 11 : i64} {
  func.func @_mlp_kernel(%arg0: i32, %arg1: memref<128x32xf32, #tpu.memory_space<vmem>>, %arg2: memref<128x32xbf16, #tpu.memory_space<vmem>>, %arg3: memref<128x1xf32, #tpu.memory_space<vmem>>, %arg4: memref<64x128xbf16, #tpu.memory_space<vmem>>, %arg5: memref<64x1xf32, #tpu.memory_space<vmem>>, %arg6: memref<64x2xf32, #tpu.memory_space<vmem>>, %arg7: memref<2x1xf32, #tpu.memory_space<vmem>>, %arg8: memref<2x128xf32, #tpu.memory_space<vmem>>) attributes {dimension_semantics = [#tpu.dimension_semantics<parallel>], iteration_bounds = array<i64: 1>, scalar_prefetch = 0 : i64, scratch_operands = 0 : i64, tpu.core_type = #tpu.core_type<tc>, window_params = [{transform_indices = @transform_0, window_bounds = array<i64: 128, 32>}, {pipeline_mode = #tpu.pipeline_mode<synchronous>, transform_indices = @transform_1, window_bounds = array<i64: 128, 32>}, {pipeline_mode = #tpu.pipeline_mode<synchronous>, transform_indices = @transform_2, window_bounds = array<i64: 128, 1>}, {pipeline_mode = #tpu.pipeline_mode<synchronous>, transform_indices = @transform_3, window_bounds = array<i64: 64, 128>}, {pipeline_mode = #tpu.pipeline_mode<synchronous>, transform_indices = @transform_4, window_bounds = array<i64: 64, 1>}, {pipeline_mode = #tpu.pipeline_mode<synchronous>, transform_indices = @transform_5, window_bounds = array<i64: 64, 2>}, {pipeline_mode = #tpu.pipeline_mode<synchronous>, transform_indices = @transform_6, window_bounds = array<i64: 2, 1>}, {transform_indices = @transform_7, window_bounds = array<i64: 2, 128>}]} {
    %c0 = arith.constant 0 : index
    %c0_0 = arith.constant 0 : index
    %0 = vector.load %arg1[%c0, %c0_0] : memref<128x32xf32, #tpu.memory_space<vmem>>, vector<128x32xf32>
    %1 = arith.truncf %0 : vector<128x32xf32> to vector<128x32xbf16>
    %c0_1 = arith.constant 0 : index
    %c0_2 = arith.constant 0 : index
    %2 = vector.load %arg2[%c0_1, %c0_2] : memref<128x32xbf16, #tpu.memory_space<vmem>>, vector<128x32xbf16>
    %cst = arith.constant dense<0.000000e+00> : vector<128x128xf32>
    %3 = tpu.matmul %2, %1, %cst {dimension_numbers = #tpu.dot_dimension_numbers<[1], [1], [0], [0], [0, 0, 1, 0], [], []>} : vector<128x32xbf16>, vector<128x32xbf16>, vector<128x128xf32> -> vector<128x128xf32>
    %c0_3 = arith.constant 0 : index
    %c0_4 = arith.constant 0 : index
    %4 = vector.load %arg3[%c0_3, %c0_4] : memref<128x1xf32, #tpu.memory_space<vmem>>, vector<128x1xf32>
    %5 = vector.broadcast %4 : vector<128x1xf32> to vector<128x128xf32>
    %6 = arith.addf %3, %5 : vector<128x128xf32>
    %cst_5 = arith.constant 0.000000e+00 : f32
    %7 = vector.broadcast %cst_5 : f32 to vector<128x128xf32>
    %8 = arith.maximumf %6, %7 : vector<128x128xf32>
    %c0_6 = arith.constant 0 : index
    %c0_7 = arith.constant 0 : index
    %9 = vector.load %arg4[%c0_6, %c0_7] : memref<64x128xbf16, #tpu.memory_space<vmem>>, vector<64x128xbf16>
    %10 = arith.truncf %8 : vector<128x128xf32> to vector<128x128xbf16>
    %cst_8 = arith.constant dense<0.000000e+00> : vector<64x128xf32>
    %11 = tpu.matmul %9, %10, %cst_8 {dimension_numbers = #tpu.dot_dimension_numbers<[1], [0], [0], [1], [0, 0, 1, 1], [], []>} : vector<64x128xbf16>, vector<128x128xbf16>, vector<64x128xf32> -> vector<64x128xf32>
    %c0_9 = arith.constant 0 : index
    %c0_10 = arith.constant 0 : index
    %12 = vector.load %arg5[%c0_9, %c0_10] : memref<64x1xf32, #tpu.memory_space<vmem>>, vector<64x1xf32>
    %13 = vector.broadcast %12 : vector<64x1xf32> to vector<64x128xf32>
    %14 = arith.addf %11, %13 : vector<64x128xf32>
    %cst_11 = arith.constant 0.000000e+00 : f32
    %15 = vector.broadcast %cst_11 : f32 to vector<64x128xf32>
    %16 = arith.maximumf %14, %15 : vector<64x128xf32>
    %c0_12 = arith.constant 0 : index
    %c0_13 = arith.constant 0 : index
    %17 = vector.load %arg6[%c0_12, %c0_13] : memref<64x2xf32, #tpu.memory_space<vmem>>, vector<64x2xf32>
    %18 = vector.extract_strided_slice %17 {offsets = [0, 0], sizes = [64, 1], strides = [1, 1]} : vector<64x2xf32> to vector<64x1xf32>
    %19 = vector.broadcast %18 : vector<64x1xf32> to vector<64x128xf32>
    %20 = arith.mulf %16, %19 : vector<64x128xf32>
    %cst_14 = arith.constant dense<0.000000e+00> : vector<128xf32>
    %21 = vector.multi_reduction <add>, %20, %cst_14 [0] : vector<64x128xf32> to vector<128xf32>
    %22 = vector.shape_cast %21 : vector<128xf32> to vector<1x128xf32>
    %23 = vector.extract_strided_slice %17 {offsets = [0, 1], sizes = [64, 1], strides = [1, 1]} : vector<64x2xf32> to vector<64x1xf32>
    %24 = vector.broadcast %23 : vector<64x1xf32> to vector<64x128xf32>
    %25 = arith.mulf %16, %24 : vector<64x128xf32>
    %cst_15 = arith.constant dense<0.000000e+00> : vector<128xf32>
    %26 = vector.multi_reduction <add>, %25, %cst_15 [0] : vector<64x128xf32> to vector<128xf32>
    %27 = vector.shape_cast %26 : vector<128xf32> to vector<1x128xf32>
    %28 = tpu.concatenate %22, %27 in 0 : vector<1x128xf32>, vector<1x128xf32> -> vector<2x128xf32>
    %c0_16 = arith.constant 0 : index
    %c0_17 = arith.constant 0 : index
    %29 = vector.load %arg7[%c0_16, %c0_17] : memref<2x1xf32, #tpu.memory_space<vmem>>, vector<2x1xf32>
    %30 = vector.broadcast %29 : vector<2x1xf32> to vector<2x128xf32>
    %31 = arith.addf %28, %30 : vector<2x128xf32>
    %c0_18 = arith.constant 0 : index
    %c0_19 = arith.constant 0 : index
    %32 = vector.load %arg8[%c0_18, %c0_19] : memref<2x128xf32, #tpu.memory_space<vmem>>, vector<2x128xf32>
    tpu.vector_store %arg8[%c0_18, %c0_19], %31 {strides = array<i32>} : memref<2x128xf32, #tpu.memory_space<vmem>>, vector<2x128xf32>,
    return
  }
  func.func @transform_0(%arg0: i32) -> (i32, i32) {
    %c0_i32 = arith.constant 0 : i32
    %c0_i32_0 = arith.constant 0 : i32
    return %arg0, %c0_i32 : i32, i32
  }
  func.func @transform_1(%arg0: i32) -> (i32, i32) {
    %c0_i32 = arith.constant 0 : i32
    %c0_i32_0 = arith.constant 0 : i32
    %c0_i32_1 = arith.constant 0 : i32
    return %c0_i32, %c0_i32_0 : i32, i32
  }
  func.func @transform_2(%arg0: i32) -> (i32, i32) {
    %c0_i32 = arith.constant 0 : i32
    %c0_i32_0 = arith.constant 0 : i32
    %c0_i32_1 = arith.constant 0 : i32
    return %c0_i32, %c0_i32_0 : i32, i32
  }
  func.func @transform_3(%arg0: i32) -> (i32, i32) {
    %c0_i32 = arith.constant 0 : i32
    %c0_i32_0 = arith.constant 0 : i32
    %c0_i32_1 = arith.constant 0 : i32
    return %c0_i32, %c0_i32_0 : i32, i32
  }
  func.func @transform_4(%arg0: i32) -> (i32, i32) {
    %c0_i32 = arith.constant 0 : i32
    %c0_i32_0 = arith.constant 0 : i32
    %c0_i32_1 = arith.constant 0 : i32
    return %c0_i32, %c0_i32_0 : i32, i32
  }
  func.func @transform_5(%arg0: i32) -> (i32, i32) {
    %c0_i32 = arith.constant 0 : i32
    %c0_i32_0 = arith.constant 0 : i32
    %c0_i32_1 = arith.constant 0 : i32
    return %c0_i32, %c0_i32_0 : i32, i32
  }
  func.func @transform_6(%arg0: i32) -> (i32, i32) {
    %c0_i32 = arith.constant 0 : i32
    %c0_i32_0 = arith.constant 0 : i32
    %c0_i32_1 = arith.constant 0 : i32
    return %c0_i32, %c0_i32_0 : i32, i32
  }
  func.func @transform_7(%arg0: i32) -> (i32, i32) {
    %c0_i32 = arith.constant 0 : i32
    %c0_i32_0 = arith.constant 0 : i32
    return %c0_i32, %arg0 : i32, i32
  }
}

</mosaic_0001>

<llo_original>
// kernel: tpu_custom_call.1
$region0: #{tpu_custom_call.1}
  #allocation0 [shape = 'u32[]', space=smem, size = 0x4, offset = 0x4, fixed_abs, tag = 'smem constant byte address 0x4 - core index']
  #allocation1 [shape = 'u32[144,128]{1,0:T(1,128)}', space=vmem, size = 0x12000, scoped, tag = 'internal scratch']
  %s0 = inlined_call_operand.vmem [shape: f32[128,32], index: 0, kind: input, shape index: {}]
  %s1 = inlined_call_operand.vmem [shape: bf16[128,32], index: 1, kind: input, shape index: {}]
  %s2 = inlined_call_operand.vmem [shape: f32[128,1], index: 2, kind: input, shape index: {}]
  %s3 = inlined_call_operand.vmem [shape: bf16[64,128], index: 3, kind: input, shape index: {}]
  %s4 = inlined_call_operand.vmem [shape: f32[64,1], index: 4, kind: input, shape index: {}]
  %s5 = inlined_call_operand.vmem [shape: f32[64,2], index: 5, kind: input, shape index: {}]
  %s6 = inlined_call_operand.vmem [shape: f32[2,1], index: 6, kind: input, shape index: {}]
  %s7 = inlined_call_operand.hbm [shape: f32[2,128], index: 7, kind: output, shape index: {}]
  %s8 = sld [smem:[#allocation0]]
  $region38: #{tpu_custom_call.1} parent=0
    _
  %s10 = ssub.s32 1, %s8
  %s11 = scalar_select 0, %s10, %s8
  $region1: #{tpu_custom_call.1} parent=0
    #allocation2 [shape = 'u8[1024]{0}', space=vmem, size = 0x400, scoped, tag = 'output window, operand 0, single buffered']
    #allocation3 [shape = 's32[1]{0}', space=sflag, size = 0x4, scoped, tag = 'scoped memory for tpu_custom_call.1']
    %12 = vsyncpa [#allocation3], 0
    // Predicated region
    $region2: #{tpu_custom_call.1} parent=1 // pred_check
      _
    $region3: #{tpu_custom_call.1} parent=1 // pred_check_branch
      %14 = sbr.rel (0) target = $region5
    $region4: #{tpu_custom_call.1} parent=1 // pred_region
      _
    $region5: #{tpu_custom_call.1} parent=1 // pred_fallthru
      _
    // Predicated region
    $region6: #{tpu_custom_call.1} parent=1 // pred_check
      _
    $region7: #{tpu_custom_call.1} parent=1 // pred_check_branch
      %16 = sbr.rel (0) target = $region9
    $region8: #{tpu_custom_call.1} parent=1 // pred_region
      _
    $region9: #{tpu_custom_call.1} parent=1 // pred_fallthru
      _
    // Predicated region
    $region10: #{tpu_custom_call.1} parent=1 // pred_check
      _
    $region11: #{tpu_custom_call.1} parent=1 // pred_check_branch
      %18 = sbr.rel (0) target = $region13
    $region12: #{tpu_custom_call.1} parent=1 // pred_region
      _
    $region13: #{tpu_custom_call.1} parent=1 // pred_fallthru
      _
    // Predicated region
    $region14: #{tpu_custom_call.1} parent=1 // pred_check
      _
    $region15: #{tpu_custom_call.1} parent=1 // pred_check_branch
      %20 = sbr.rel (0) target = $region17
    $region16: #{tpu_custom_call.1} parent=1 // pred_region
      _
    $region17: #{tpu_custom_call.1} parent=1 // pred_fallthru
      _
    // Predicated region
    $region18: #{tpu_custom_call.1} parent=1 // pred_check
      _
    $region19: #{tpu_custom_call.1} parent=1 // pred_check_branch
      %22 = sbr.rel (0) target = $region21
    $region20: #{tpu_custom_call.1} parent=1 // pred_region
      _
    $region21: #{tpu_custom_call.1} parent=1 // pred_fallthru
      _
    // Predicated region
    $region22: #{tpu_custom_call.1} parent=1 // pred_check
      _
    $region23: #{tpu_custom_call.1} parent=1 // pred_check_branch
      %24 = sbr.rel (0) target = $region25
    $region24: #{tpu_custom_call.1} parent=1 // pred_region
      _
    $region25: #{tpu_custom_call.1} parent=1 // pred_fallthru
      _
    // Predicated region
    $region26: #{tpu_custom_call.1} parent=1 // pred_check
      _
    $region27: #{tpu_custom_call.1} parent=1 // pred_check_branch
      %26 = sbr.rel (0) target = $region29
    $region28: #{tpu_custom_call.1} parent=1 // pred_region
      _
    $region29: #{tpu_custom_call.1} parent=1 // pred_fallthru
      _
    %v28 = vld [vmem:[%s0] sm:$0xff]
    %v29 = vld [vmem:[%s0 + $0x8] sm:$0xff]
    %v30 = vld [vmem:[%s0 + $0x10] sm:$0xff]
    %v31 = vld [vmem:[%s0 + $0x18] sm:$0xff]
    %v32 = vld [vmem:[%s0 + $0x20] sm:$0xff]
    %v33 = vld [vmem:[%s0 + $0x28] sm:$0xff]
    %v34 = vld [vmem:[%s0 + $0x30] sm:$0xff]
    %v35 = vld [vmem:[%s0 + $0x38] sm:$0xff]
    %v36 = vld [vmem:[%s0 + $0x40] sm:$0xff]
    %v37 = vld [vmem:[%s0 + $0x48] sm:$0xff]
    %v38 = vld [vmem:[%s0 + $0x50] sm:$0xff]
    %v39 = vld [vmem:[%s0 + $0x58] sm:$0xff]
    %v40 = vld [vmem:[%s0 + $0x60] sm:$0xff]
    %v41 = vld [vmem:[%s0 + $0x68] sm:$0xff]
    %v42 = vld [vmem:[%s0 + $0x70] sm:$0xff]
    %v43 = vld [vmem:[%s0 + $0x78] sm:$0xff]
    %v44 = vpack.c.bf16 %v29, %v28
    %v45 = vpack.c.bf16 %v31, %v30
    %v46 = vpack.c.bf16 %v33, %v32
    %v47 = vpack.c.bf16 %v35, %v34
    %v48 = vpack.c.bf16 %v37, %v36
    %v49 = vpack.c.bf16 %v39, %v38
    %v50 = vpack.c.bf16 %v41, %v40
    %v51 = vpack.c.bf16 %v43, %v42
    %v52 = vld [vmem:[%s1] sm:$0xf]
    %v53 = vld [vmem:[%s1 + $0x4] sm:$0xf]
    %v54 = vld [vmem:[%s1 + $0x8] sm:$0xf]
    %v55 = vld [vmem:[%s1 + $0xc] sm:$0xf]
    %v56 = vld [vmem:[%s1 + $0x10] sm:$0xf]
    %v57 = vld [vmem:[%s1 + $0x14] sm:$0xf]
    %v58 = vld [vmem:[%s1 + $0x18] sm:$0xf]
    %v59 = vld [vmem:[%s1 + $0x1c] sm:$0xf]
    %v60 = vld [vmem:[%s1 + $0x20] sm:$0xf]
    %v61 = vld [vmem:[%s1 + $0x24] sm:$0xf]
    %v62 = vld [vmem:[%s1 + $0x28] sm:$0xf]
    %v63 = vld [vmem:[%s1 + $0x2c] sm:$0xf]
    %v64 = vld [vmem:[%s1 + $0x30] sm:$0xf]
    %v65 = vld [vmem:[%s1 + $0x34] sm:$0xf]
    %v66 = vld [vmem:[%s1 + $0x38] sm:$0xf]
    %v67 = vld [vmem:[%s1 + $0x3c] sm:$0xf]
    %v68 = vld [vmem:[%s2] sm:$0xff]
    %v69 = vld [vmem:[%s2 + $0x8] sm:$0xff]
    %v70 = vld [vmem:[%s2 + $0x10] sm:$0xff]
    %v71 = vld [vmem:[%s2 + $0x18] sm:$0xff]
    %v72 = vld [vmem:[%s2 + $0x20] sm:$0xff]
    %v73 = vld [vmem:[%s2 + $0x28] sm:$0xff]
    %v74 = vld [vmem:[%s2 + $0x30] sm:$0xff]
    %v75 = vld [vmem:[%s2 + $0x38] sm:$0xff]
    %v76 = vld [vmem:[%s2 + $0x40] sm:$0xff]
    %v77 = vld [vmem:[%s2 + $0x48] sm:$0xff]
    %v78 = vld [vmem:[%s2 + $0x50] sm:$0xff]
    %v79 = vld [vmem:[%s2 + $0x58] sm:$0xff]
    %v80 = vld [vmem:[%s2 + $0x60] sm:$0xff]
    %v81 = vld [vmem:[%s2 + $0x68] sm:$0xff]
    %v82 = vld [vmem:[%s2 + $0x70] sm:$0xff]
    %v83 = vld [vmem:[%s2 + $0x78] sm:$0xff]
    %85 = vset.pattern.permute.xlu0 0
    %86 = vperm.xlu0 %85, %v68
    %v87 = vpop.permute.xlu0 %86
    %90 = vset.pattern.permute.xlu0 0
    %91 = vperm.xlu0 %90, %v69
    %v92 = vpop.permute.xlu0 %91
    %95 = vset.pattern.permute.xlu0 0
    %96 = vperm.xlu0 %95, %v70
    %v97 = vpop.permute.xlu0 %96
    %100 = vset.pattern.permute.xlu0 0
    %101 = vperm.xlu0 %100, %v71
    %v102 = vpop.permute.xlu0 %101
    %105 = vset.pattern.permute.xlu0 0
    %106 = vperm.xlu0 %105, %v72
    %v107 = vpop.permute.xlu0 %106
    %110 = vset.pattern.permute.xlu0 0
    %111 = vperm.xlu0 %110, %v73
    %v112 = vpop.permute.xlu0 %111
    %115 = vset.pattern.permute.xlu0 0
    %116 = vperm.xlu0 %115, %v74
    %v117 = vpop.permute.xlu0 %116
    %120 = vset.pattern.permute.xlu0 0
    %121 = vperm.xlu0 %120, %v75
    %v122 = vpop.permute.xlu0 %121
    %125 = vset.pattern.permute.xlu0 0
    %126 = vperm.xlu0 %125, %v76
    %v127 = vpop.permute.xlu0 %126
    %130 = vset.pattern.permute.xlu0 0
    %131 = vperm.xlu0 %130, %v77
    %v132 = vpop.permute.xlu0 %131
    %135 = vset.pattern.permute.xlu0 0
    %136 = vperm.xlu0 %135, %v78
    %v137 = vpop.permute.xlu0 %136
    %140 = vset.pattern.permute.xlu0 0
    %141 = vperm.xlu0 %140, %v79
    %v142 = vpop.permute.xlu0 %141
    %145 = vset.pattern.permute.xlu0 0
    %146 = vperm.xlu0 %145, %v80
    %v147 = vpop.permute.xlu0 %146
    %150 = vset.pattern.permute.xlu0 0
    %151 = vperm.xlu0 %150, %v81
    %v152 = vpop.permute.xlu0 %151
    %155 = vset.pattern.permute.xlu0 0
    %156 = vperm.xlu0 %155, %v82
    %v157 = vpop.permute.xlu0 %156
    %160 = vset.pattern.permute.xlu0 0
    %161 = vperm.xlu0 %160, %v83
    %v162 = vpop.permute.xlu0 %161
    %v180 = vunpack.c.l.b16 %v52
    %v181 = vunpack.c.l.b16 %v53
    %v182 = vunpack.c.l.b16 %v54
    %v183 = vunpack.c.l.b16 %v55
    %v184 = vunpack.c.l.b16 %v56
    %v185 = vunpack.c.l.b16 %v57
    %v186 = vunpack.c.l.b16 %v58
    %v187 = vunpack.c.l.b16 %v59
    %v188 = vunpack.c.l.b16 %v60
    %v189 = vunpack.c.l.b16 %v61
    %v190 = vunpack.c.l.b16 %v62
    %v191 = vunpack.c.l.b16 %v63
    %v192 = vunpack.c.l.b16 %v64
    %v193 = vunpack.c.l.b16 %v65
    %v194 = vunpack.c.l.b16 %v66
    %v195 = vunpack.c.l.b16 %v67
    %v196 = vpack.c.b16 %v181, %v180
    %v197 = vpack.c.b16 %v183, %v182
    %v198 = vpack.c.b16 %v185, %v184
    %v199 = vpack.c.b16 %v187, %v186
    %v200 = vpack.c.b16 %v189, %v188
    %v201 = vpack.c.b16 %v191, %v190
    %v202 = vpack.c.b16 %v193, %v192
    %v203 = vpack.c.b16 %v195, %v194
    %vm204 = vcmask 261120
    %v206 = vsel %vm204, %v196, 0
    %v209 = vsel %vm204, %v197, 0
    %v212 = vsel %vm204, %v198, 0
    %v215 = vsel %vm204, %v199, 0
    %v218 = vsel %vm204, %v200, 0
    %v221 = vsel %vm204, %v201, 0
    %v224 = vsel %vm204, %v202, 0
    %v227 = vsel %vm204, %v203, 0
    %v230 = vsel %vm204, %v44, 0
    %v233 = vsel %vm204, %v45, 0
    %v236 = vsel %vm204, %v46, 0
    %v239 = vsel %vm204, %v47, 0
    %v242 = vsel %vm204, %v48, 0
    %v245 = vsel %vm204, %v49, 0
    %v248 = vsel %vm204, %v50, 0
    %v251 = vsel %vm204, %v51, 0
    %253 = vmatprep.subr.bf16.mxu0 0
    %254 = vmatpush1.bf16.xpose.msra.mxu0 %v230
    %255 = vmatprep.subr.bf16.mxu0 0
    %256 = vmatpush1.bf16.xpose.msra.mxu0 %v233
    %257 = vmatprep.subr.bf16.mxu0 0
    %258 = vmatpush1.bf16.xpose.msra.mxu0 %v236
    %259 = vmatprep.subr.bf16.mxu0 0
    %260 = vmatpush1.bf16.xpose.msra.mxu0 %v239
    %261 = vmatprep.subr.bf16.mxu0 0
    %262 = vmatpush1.bf16.xpose.msra.mxu0 %v242
    %263 = vmatprep.subr.bf16.mxu0 0
    %264 = vmatpush1.bf16.xpose.msra.mxu0 %v245
    %265 = vmatprep.subr.bf16.mxu0 0
    %266 = vmatpush1.bf16.xpose.msra.mxu0 %v248
    %267 = vmatprep.subr.bf16.mxu0 0
    %268 = vmatpush1.bf16.xpose.msra.mxu0 %v251
    %269 = vmatprep.subr.bf16.mxu0 0
    %270 = vmatpush1.bf16.xpose.msra.mxu0 0
    %271 = vmatprep.subr.bf16.mxu0 0
    %272 = vmatpush1.bf16.xpose.msra.mxu0 0
    %273 = vmatprep.subr.bf16.mxu0 0
    %274 = vmatpush1.bf16.xpose.msra.mxu0 0
    %275 = vmatprep.subr.bf16.mxu0 0
    %276 = vmatpush1.bf16.xpose.msra.mxu0 0
    %277 = vmatprep.subr.bf16.mxu0 0
    %278 = vmatpush1.bf16.xpose.msra.mxu0 0
    %279 = vmatprep.subr.bf16.mxu0 0
    %280 = vmatpush1.bf16.xpose.msra.mxu0 0
    %281 = vmatprep.subr.bf16.mxu0 0
    %282 = vmatpush1.bf16.xpose.msra.mxu0 0
    %283 = vmatprep.subr.bf16.mxu0 0
    %284 = vmatpush1.bf16.xpose.msra.mxu0 0
    %285 = vmatprep.mubr.bf16.mxu0 0
    %286 = vmatmul.mubr.bf16.gmra.mrb[0].mxu0 %v206
    %v287 = vpop.f32.mrb[0].mxu0
    %v288 = vadd.f32 %v87, %v287
    %v289 = vpop.f32.mrb[0].mxu0
    %v290 = vpop.f32.mrb[0].mxu0
    %v291 = vadd.f32 %v92, %v290
    %v292 = vpop.f32.mrb[0].mxu0
    %293 = vmatprep.mubr.bf16.mxu0 0
    %294 = vmatmul.mubr.bf16.gmra.mrb[0].mxu0 %v209
    %v295 = vpop.f32.mrb[0].mxu0
    %v296 = vadd.f32 %v97, %v295
    %v297 = vpop.f32.mrb[0].mxu0
    %v298 = vpop.f32.mrb[0].mxu0
    %v299 = vadd.f32 %v102, %v298
    %v300 = vpop.f32.mrb[0].mxu0
    %301 = vmatprep.mubr.bf16.mxu0 0
    %302 = vmatmul.mubr.bf16.gmra.mrb[0].mxu0 %v212
    %v303 = vpop.f32.mrb[0].mxu0
    %v304 = vadd.f32 %v107, %v303
    %v305 = vpop.f32.mrb[0].mxu0
    %v306 = vpop.f32.mrb[0].mxu0
    %v307 = vadd.f32 %v112, %v306
    %v308 = vpop.f32.mrb[0].mxu0
    %309 = vmatprep.mubr.bf16.mxu0 0
    %310 = vmatmul.mubr.bf16.gmra.mrb[0].mxu0 %v215
    %v311 = vpop.f32.mrb[0].mxu0
    %v312 = vadd.f32 %v117, %v311
    %v313 = vpop.f32.mrb[0].mxu0
    %v314 = vpop.f32.mrb[0].mxu0
    %v315 = vadd.f32 %v122, %v314
    %v316 = vpop.f32.mrb[0].mxu0
    %317 = vmatprep.mubr.bf16.mxu0 0
    %318 = vmatmul.mubr.bf16.gmra.mrb[0].mxu0 %v218
    %v319 = vpop.f32.mrb[0].mxu0
    %v320 = vadd.f32 %v127, %v319
    %v321 = vpop.f32.mrb[0].mxu0
    %v322 = vpop.f32.mrb[0].mxu0
    %v323 = vadd.f32 %v132, %v322
    %v324 = vpop.f32.mrb[0].mxu0
    %325 = vmatprep.mubr.bf16.mxu0 0
    %326 = vmatmul.mubr.bf16.gmra.mrb[0].mxu0 %v221
    %v327 = vpop.f32.mrb[0].mxu0
    %v328 = vadd.f32 %v137, %v327
    %v329 = vpop.f32.mrb[0].mxu0
    %v330 = vpop.f32.mrb[0].mxu0
    %v331 = vadd.f32 %v142, %v330
    %v332 = vpop.f32.mrb[0].mxu0
    %333 = vmatprep.mubr.bf16.mxu0 0
    %334 = vmatmul.mubr.bf16.gmra.mrb[0].mxu0 %v224
    %v335 = vpop.f32.mrb[0].mxu0
    %v336 = vadd.f32 %v147, %v335
    %v337 = vpop.f32.mrb[0].mxu0
    %v338 = vpop.f32.mrb[0].mxu0
    %v339 = vadd.f32 %v152, %v338
    %v340 = vpop.f32.mrb[0].mxu0
    %341 = vmatprep.mubr.bf16.mxu0 0
    %342 = vmatmul.mubr.bf16.gmra.mrb[0].mxu0 %v227
    %v343 = vpop.f32.mrb[0].mxu0
    %v344 = vadd.f32 %v157, %v343
    %v345 = vpop.f32.mrb[0].mxu0
    %v346 = vpop.f32.mrb[0].mxu0
    %v347 = vadd.f32 %v162, %v346
    %v348 = vpop.f32.mrb[0].mxu0
    %349 = vdwg.mxu0
    %v350 = vmax.f32 %v288, 0.0
    %v351 = vmax.f32 %v291, 0.0
    %v352 = vmax.f32 %v296, 0.0
    %v353 = vmax.f32 %v299, 0.0
    %v354 = vmax.f32 %v304, 0.0
    %v355 = vmax.f32 %v307, 0.0
    %v356 = vmax.f32 %v312, 0.0
    %v357 = vmax.f32 %v315, 0.0
    %v358 = vmax.f32 %v320, 0.0
    %v359 = vmax.f32 %v323, 0.0
    %v360 = vmax.f32 %v328, 0.0
    %v361 = vmax.f32 %v331, 0.0
    %v362 = vmax.f32 %v336, 0.0
    %v363 = vmax.f32 %v339, 0.0
    %v364 = vmax.f32 %v344, 0.0
    %v365 = vmax.f32 %v347, 0.0
    %v366 = vld [vmem:[%s3] sm:$0xf]
    %v367 = vld [vmem:[%s3 + $0x4] sm:$0xf]
    %v368 = vld [vmem:[%s3 + $0x8] sm:$0xf]
    %v369 = vld [vmem:[%s3 + $0xc] sm:$0xf]
    %v370 = vld [vmem:[%s3 + $0x10] sm:$0xf]
    %v371 = vld [vmem:[%s3 + $0x14] sm:$0xf]
    %v372 = vld [vmem:[%s3 + $0x18] sm:$0xf]
    %v373 = vld [vmem:[%s3 + $0x1c] sm:$0xf]
    %v374 = vpack.c.bf16 %v351, %v350
    %v375 = vpack.c.bf16 %v353, %v352
    %v376 = vpack.c.bf16 %v355, %v354
    %v377 = vpack.c.bf16 %v357, %v356
    %v378 = vpack.c.bf16 %v359, %v358
    %v379 = vpack.c.bf16 %v361, %v360
    %v380 = vpack.c.bf16 %v363, %v362
    %v381 = vpack.c.bf16 %v365, %v364
    %v382 = vld [vmem:[%s4] sm:$0xff]
    %v383 = vld [vmem:[%s4 + $0x8] sm:$0xff]
    %v384 = vld [vmem:[%s4 + $0x10] sm:$0xff]
    %v385 = vld [vmem:[%s4 + $0x18] sm:$0xff]
    %v386 = vld [vmem:[%s4 + $0x20] sm:$0xff]
    %v387 = vld [vmem:[%s4 + $0x28] sm:$0xff]
    %v388 = vld [vmem:[%s4 + $0x30] sm:$0xff]
    %v389 = vld [vmem:[%s4 + $0x38] sm:$0xff]
    %391 = vset.pattern.permute.xlu0 0
    %392 = vperm.xlu0 %391, %v382
    %v393 = vpop.permute.xlu0 %392
    %396 = vset.pattern.permute.xlu0 0
    %397 = vperm.xlu0 %396, %v383
    %v398 = vpop.permute.xlu0 %397
    %401 = vset.pattern.permute.xlu0 0
    %402 = vperm.xlu0 %401, %v384
    %v403 = vpop.permute.xlu0 %402
    %406 = vset.pattern.permute.xlu0 0
    %407 = vperm.xlu0 %406, %v385
    %v408 = vpop.permute.xlu0 %407
    %411 = vset.pattern.permute.xlu0 0
    %412 = vperm.xlu0 %411, %v386
    %v413 = vpop.permute.xlu0 %412
    %416 = vset.pattern.permute.xlu0 0
    %417 = vperm.xlu0 %416, %v387
    %v418 = vpop.permute.xlu0 %417
    %421 = vset.pattern.permute.xlu0 0
    %422 = vperm.xlu0 %421, %v388
    %v423 = vpop.permute.xlu0 %422
    %426 = vset.pattern.permute.xlu0 0
    %427 = vperm.xlu0 %426, %v389
    %v428 = vpop.permute.xlu0 %427
    %v438 = vunpack.c.l.b16 %v366
    %v439 = vunpack.c.l.b16 %v367
    %v440 = vunpack.c.l.b16 %v368
    %v441 = vunpack.c.l.b16 %v369
    %v442 = vunpack.c.l.b16 %v370
    %v443 = vunpack.c.l.b16 %v371
    %v444 = vunpack.c.l.b16 %v372
    %v445 = vunpack.c.l.b16 %v373
    %v446 = vpack.c.b16 %v439, %v438
    %v447 = vpack.c.b16 %v441, %v440
    %v448 = vpack.c.b16 %v443, %v442
    %v449 = vpack.c.b16 %v445, %v444
    %454 = vmatprep.subr.bf16.mxu0 0
    %455 = vmatpush1.bf16.msra.mxu0 %v374
    %456 = vmatprep.subr.bf16.mxu0 0
    %457 = vmatpush1.bf16.msra.mxu0 %v375
    %458 = vmatprep.subr.bf16.mxu0 0
    %459 = vmatpush1.bf16.msra.mxu0 %v376
    %460 = vmatprep.subr.bf16.mxu0 0
    %461 = vmatpush1.bf16.msra.mxu0 %v377
    %462 = vmatprep.subr.bf16.mxu0 0
    %463 = vmatpush1.bf16.msra.mxu0 %v378
    %464 = vmatprep.subr.bf16.mxu0 0
    %465 = vmatpush1.bf16.msra.mxu0 %v379
    %466 = vmatprep.subr.bf16.mxu0 0
    %467 = vmatpush1.bf16.msra.mxu0 %v380
    %468 = vmatprep.subr.bf16.mxu0 0
    %469 = vmatpush1.bf16.msra.mxu0 %v381
    %470 = vmatprep.subr.bf16.mxu0 0
    %471 = vmatpush1.bf16.msra.mxu0 0
    %472 = vmatprep.subr.bf16.mxu0 0
    %473 = vmatpush1.bf16.msra.mxu0 0
    %474 = vmatprep.subr.bf16.mxu0 0
    %475 = vmatpush1.bf16.msra.mxu0 0
    %476 = vmatprep.subr.bf16.mxu0 0
    %477 = vmatpush1.bf16.msra.mxu0 0
    %478 = vmatprep.subr.bf16.mxu0 0
    %479 = vmatpush1.bf16.msra.mxu0 0
    %480 = vmatprep.subr.bf16.mxu0 0
    %481 = vmatpush1.bf16.msra.mxu0 0
    %482 = vmatprep.subr.bf16.mxu0 0
    %483 = vmatpush1.bf16.msra.mxu0 0
    %484 = vmatprep.subr.bf16.mxu0 0
    %485 = vmatpush1.bf16.msra.mxu0 0
    %486 = vmatprep.mubr.bf16.mxu0 0
    %487 = vmatmul.mubr.bf16.gmra.mrb[0].mxu0 %v446
    %v488 = vpop.f32.mrb[0].mxu0
    %v489 = vadd.f32 %v393, %v488
    %v490 = vpop.f32.mrb[0].mxu0
    %v491 = vpop.f32.mrb[0].mxu0
    %v492 = vadd.f32 %v398, %v491
    %v493 = vpop.f32.mrb[0].mxu0
    %494 = vmatprep.mubr.bf16.mxu0 0
    %495 = vmatmul.mubr.bf16.gmra.mrb[0].mxu0 %v447
    %v496 = vpop.f32.mrb[0].mxu0
    %v497 = vadd.f32 %v403, %v496
    %v498 = vpop.f32.mrb[0].mxu0
    %v499 = vpop.f32.mrb[0].mxu0
    %v500 = vadd.f32 %v408, %v499
    %v501 = vpop.f32.mrb[0].mxu0
    %502 = vmatprep.mubr.bf16.mxu0 0
    %503 = vmatmul.mubr.bf16.gmra.mrb[0].mxu0 %v448
    %v504 = vpop.f32.mrb[0].mxu0
    %v505 = vadd.f32 %v413, %v504
    %v506 = vpop.f32.mrb[0].mxu0
    %v507 = vpop.f32.mrb[0].mxu0
    %v508 = vadd.f32 %v418, %v507
    %v509 = vpop.f32.mrb[0].mxu0
    %510 = vmatprep.mubr.bf16.mxu0 0
    %511 = vmatmul.mubr.bf16.gmra.mrb[0].mxu0 %v449
    %v512 = vpop.f32.mrb[0].mxu0
    %v513 = vadd.f32 %v423, %v512
    %v514 = vpop.f32.mrb[0].mxu0
    %v515 = vpop.f32.mrb[0].mxu0
    %v516 = vadd.f32 %v428, %v515
    %v517 = vpop.f32.mrb[0].mxu0
    %518 = vdwg.mxu0
    %v519 = vmax.f32 %v489, 0.0
    %v520 = vmax.f32 %v492, 0.0
    %v521 = vmax.f32 %v497, 0.0
    %v522 = vmax.f32 %v500, 0.0
    %v523 = vmax.f32 %v505, 0.0
    %v524 = vmax.f32 %v508, 0.0
    %v525 = vmax.f32 %v513, 0.0
    %v526 = vmax.f32 %v516, 0.0
    %v527 = vld [vmem:[%s5] sm:$0xff]
    %v528 = vld [vmem:[%s5 + $0x8] sm:$0xff]
    %v529 = vld [vmem:[%s5 + $0x10] sm:$0xff]
    %v530 = vld [vmem:[%s5 + $0x18] sm:$0xff]
    %v531 = vld [vmem:[%s5 + $0x20] sm:$0xff]
    %v532 = vld [vmem:[%s5 + $0x28] sm:$0xff]
    %v533 = vld [vmem:[%s5 + $0x30] sm:$0xff]
    %v534 = vld [vmem:[%s5 + $0x38] sm:$0xff]
    %536 = vset.pattern.permute.xlu0 0
    %537 = vperm.xlu0 %536, %v527
    %v538 = vpop.permute.xlu0 %537
    %541 = vset.pattern.permute.xlu0 0
    %542 = vperm.xlu0 %541, %v528
    %v543 = vpop.permute.xlu0 %542
    %546 = vset.pattern.permute.xlu0 0
    %547 = vperm.xlu0 %546, %v529
    %v548 = vpop.permute.xlu0 %547
    %551 = vset.pattern.permute.xlu0 0
    %552 = vperm.xlu0 %551, %v530
    %v553 = vpop.permute.xlu0 %552
    %556 = vset.pattern.permute.xlu0 0
    %557 = vperm.xlu0 %556, %v531
    %v558 = vpop.permute.xlu0 %557
    %561 = vset.pattern.permute.xlu0 0
    %562 = vperm.xlu0 %561, %v532
    %v563 = vpop.permute.xlu0 %562
    %566 = vset.pattern.permute.xlu0 0
    %567 = vperm.xlu0 %566, %v533
    %v568 = vpop.permute.xlu0 %567
    %571 = vset.pattern.permute.xlu0 0
    %572 = vperm.xlu0 %571, %v534
    %v573 = vpop.permute.xlu0 %572
    %v575 = vmul.f32 %v519, %v538
    %v576 = vmul.f32 %v520, %v543
    %v577 = vmul.f32 %v521, %v548
    %v578 = vmul.f32 %v522, %v553
    %v579 = vmul.f32 %v523, %v558
    %v580 = vmul.f32 %v524, %v563
    %v581 = vmul.f32 %v525, %v568
    %v582 = vmul.f32 %v526, %v573
    %v583 = vadd.f32 %v575, %v576
    %v584 = vadd.f32 %v583, %v577
    %v585 = vadd.f32 %v584, %v578
    %v586 = vadd.f32 %v585, %v579
    %v587 = vadd.f32 %v586, %v580
    %v588 = vadd.f32 %v587, %v581
    %v589 = vadd.f32 %v588, %v582
    %v590 = vrot.slane %v589, 4
    %v591 = vadd.f32 %v589, %v590
    %v592 = vrot.slane %v591, 2
    %v593 = vadd.f32 %v591, %v592
    %v594 = vrot.slane %v593, 1
    %v595 = vadd.f32 %v593, %v594
    %596 = vset.pattern.permute.xlu0 1
    %597 = vperm.xlu0 %596, %v527
    %v598 = vpop.permute.xlu0 %597
    %600 = vset.pattern.permute.xlu0 1
    %601 = vperm.xlu0 %600, %v528
    %v602 = vpop.permute.xlu0 %601
    %604 = vset.pattern.permute.xlu0 1
    %605 = vperm.xlu0 %604, %v529
    %v606 = vpop.permute.xlu0 %605
    %608 = vset.pattern.permute.xlu0 1
    %609 = vperm.xlu0 %608, %v530
    %v610 = vpop.permute.xlu0 %609
    %612 = vset.pattern.permute.xlu0 1
    %613 = vperm.xlu0 %612, %v531
    %v614 = vpop.permute.xlu0 %613
    %616 = vset.pattern.permute.xlu0 1
    %617 = vperm.xlu0 %616, %v532
    %v618 = vpop.permute.xlu0 %617
    %620 = vset.pattern.permute.xlu0 1
    %621 = vperm.xlu0 %620, %v533
    %v622 = vpop.permute.xlu0 %621
    %624 = vset.pattern.permute.xlu0 1
    %625 = vperm.xlu0 %624, %v534
    %v626 = vpop.permute.xlu0 %625
    %v628 = vmul.f32 %v519, %v598
    %v629 = vmul.f32 %v520, %v602
    %v630 = vmul.f32 %v521, %v606
    %v631 = vmul.f32 %v522, %v610
    %v632 = vmul.f32 %v523, %v614
    %v633 = vmul.f32 %v524, %v618
    %v634 = vmul.f32 %v525, %v622
    %v635 = vmul.f32 %v526, %v626
    %v636 = vadd.f32 %v628, %v629
    %v637 = vadd.f32 %v636, %v630
    %v638 = vadd.f32 %v637, %v631
    %v639 = vadd.f32 %v638, %v632
    %v640 = vadd.f32 %v639, %v633
    %v641 = vadd.f32 %v640, %v634
    %v642 = vadd.f32 %v641, %v635
    %v643 = vrot.slane %v642, 4
    %v644 = vadd.f32 %v642, %v643
    %v645 = vrot.slane %v644, 2
    %v646 = vadd.f32 %v644, %v645
    %v647 = vrot.slane %v646, 1
    %v648 = vadd.f32 %v646, %v647
    %vm649 = vcmask 1040384
    %v650 = vsel %vm649, %v595, %v648
    %v651 = vld [vmem:[%s6] sm:$0x3]
    %653 = vset.pattern.permute.xlu0 0
    %654 = vperm.xlu0 %653, %v651
    %v655 = vpop.permute.xlu0 %654
    %v657 = vadd.f32 %v650, %v655
    %658 = vst [vmem:[#allocation2] sm:$0x3] %v657
    // Predicated region
    $region30: #{tpu_custom_call.1} parent=1 // pred_check
      _
    $region31: #{tpu_custom_call.1} parent=1 // pred_check_branch
      %660 = sbr.rel (0) target = $region33
    $region32: #{tpu_custom_call.1} parent=1 // pred_region
      %s662 = ssub.s32 32, 32
      %663 = vsyncadd [#allocation3], %s662
      %s665 = sshll.u32 [#allocation2], 4
      %s666 = int_to_ptr.vmem [resolvable:$true] %s665
      %668 = dma.vmem_to_hbm [thread:$0]  %s666, 32, %s7, [#allocation3]
    $region33: #{tpu_custom_call.1} parent=1 // pred_fallthru
      _
    // Predicated region
    $region34: #{tpu_custom_call.1} parent=1 // pred_check
      _
    $region35: #{tpu_custom_call.1} parent=1 // pred_check_branch
      %670 = sbr.rel (0) target = $region37
    $region36: #{tpu_custom_call.1} parent=1 // pred_region
      %671 = dma.done [#allocation3], 32
    $region37: #{tpu_custom_call.1} parent=1 // pred_fallthru
      _
    %672 = vsyncpa [#allocation3], 1

</llo_original>
